<compile_context>
chip_gen: v7x
topology: tpu7x:2x2x1
jax: 0.10.0
libtpu: 0.0.40
codegen_flags: <defaults>
</compile_context>

<pallas_src>
import jax
import jax.numpy as jnp
from jax.experimental import pallas as pl
from jax.experimental.pallas import tpu as pltpu

LN_EPS = 1e-7  # config.layer_norm_eps


def conv_layer_kernel(x_ref, hc_ref, res_ref, mask_ref, w_ref, p_ref, out_ref):
    tS, H = x_ref.shape[1], x_ref.shape[2]
    cdt = w_ref.dtype                      # conv compute dtype (bf16)

    # Single cast of the activation tile (no-op when I/O dtype == conv dtype).
    x_c = x_ref[0].astype(cdt)                                     # (tS, H)
    hc = hc_ref[0, 0].astype(jnp.float32)                          # (2, H) halo taps
    # Hoisted lane-broadcast of the 0/1 mask, reused for both multiplies.
    mask_b = jnp.broadcast_to(mask_ref[0].astype(jnp.float32), (tS, H))

    # Conv1d(kernel_size=3, padding=1, groups=1): three unshifted MXU dots; the +-1
    # sequence shifts are applied to the f32 results with pltpu.roll (XLU) and the
    # wrapped boundary row is replaced by the precomputed halo contribution (which is
    # exactly zero at the true sequence ends, i.e. the conv zero padding).
    y0 = jnp.dot(x_c, w_ref[0], preferred_element_type=jnp.float32)
    y1 = jnp.dot(x_c, w_ref[1], preferred_element_type=jnp.float32)
    y2 = jnp.dot(x_c, w_ref[2], preferred_element_type=jnp.float32)

    row = jax.lax.broadcasted_iota(jnp.int32, (tS, 1), 0)
    c0 = jnp.where(row == 0, hc[0:1, :], pltpu.roll(y0, shift=1, axis=0))
    c2 = jnp.where(row == tS - 1, hc[1:2, :], pltpu.roll(y2, shift=tS - 1, axis=0))

    p = p_ref[...].astype(jnp.float32)     # (3, H): [conv bias, LN gamma, LN beta]
    acc = y1 + c0 + c2 + p[0:1, :]

    # out.masked_fill_(rmask, 0); tanh(dropout(out)) -- dropout identity in eval mode
    # and tanh(0) == 0, so masking before tanh is equivalent.
    out = jnp.tanh(acc * mask_b)

    # layer_norm_input = residual_states + out; LayerNorm over hidden dim in f32.
    # Variance as E[x^2] - mean^2: two independent lane reductions, shorter epilogue.
    ln_in = res_ref[0].astype(jnp.float32) + out
    mean = jnp.mean(ln_in, axis=-1, keepdims=True)
    mean_sq = jnp.mean(ln_in * ln_in, axis=-1, keepdims=True)
    var = jnp.maximum(mean_sq - mean * mean, 0.0)
    y = (ln_in - mean) * jax.lax.rsqrt(var + LN_EPS)
    y = y * p[1:2, :] + p[2:3, :]

    # output_states = output * input_mask.unsqueeze(2)
    out_ref[0] = (y * mask_b).astype(out_ref.dtype)


def _vmem_capacity_bytes(default=128 * 1024 * 1024):
    try:
        cap = getattr(pltpu.get_tpu_info(), "vmem_capacity_bytes", None)
        if cap:
            return int(cap)
    except Exception:
        pass
    return default


def _choose_tile_s(S, *, bytes_per_row, resident_bytes, vmem_cap, max_tile,
                   prefer_even_ns=False):
    """Largest S-tile that divides S, is a multiple of 8, and (double-buffered,
    together with the resident weight block) fits the per-chip VMEM budget."""
    budget = int(0.6 * vmem_cap) - resident_bytes
    budget = max(budget, 1 << 20)
    cap = min(int(max_tile), budget // max(1, bytes_per_row))
    cap -= cap % 8
    cap = max(8, cap)
    if S <= cap:
        return S
    best = None
    for t in range(cap, 7, -8):
        if S % t == 0:
            if best is None:
                best = t
            if not prefer_even_ns or (S // t) % 2 == 0:
                return t
    # No multiple-of-8 divisor <= cap: fall back to whole-sequence tiles.
    # (The caller checks the resulting VMEM estimate and fails loudly if too big.)
    return best if best is not None else S


def conv_layer(hidden_states, residual_states, input_mask, w, b, gamma, beta, *,
               io_dtype=jnp.bfloat16, conv_dtype=jnp.bfloat16, max_tile_s=None):
    """hidden_states / residual_states: (B, S, H); input_mask: (B, S) 0/1.
    w: (H_out, H_in, 3) torch Conv1d weight layout; b, gamma, beta: (H,).
    Activations cross the HBM boundary in io_dtype (bf16 by default)."""
    B, S, H = hidden_states.shape
    io_dtype = jnp.dtype(io_dtype)
    conv_dtype = jnp.dtype(conv_dtype)
    io_isz = io_dtype.itemsize
    conv_isz = conv_dtype.itemsize
    lane = 128

    vmem_cap = _vmem_capacity_bytes()
    if max_tile_s is None:
        # 128 MiB chips (v5e/v6e) can afford 1024-row tiles; v7x (64 MiB/TC) stays at 512.
        max_tile_s = 1024 if vmem_cap >= (100 << 20) else 512

    w_bytes = 3 * H * H * conv_isz
    p_bytes = 8 * max(H, lane) * 4
    # Per-sequence-row VMEM: double-buffered hidden/residual/output streams,
    # lane-padded (tS,1) mask, plus the f32 working set held in the kernel body.
    bytes_per_row = 2 * (3 * H * io_isz + lane * 4) + 8 * H * 4
    tS = _choose_tile_s(
        S, bytes_per_row=bytes_per_row, resident_bytes=w_bytes + p_bytes,
        vmem_cap=vmem_cap, max_tile=max_tile_s,
        prefer_even_ns=(B % 2 == 1 and vmem_cap < (100 << 20)))
    nS = S // tS

    # --- glue (plain JAX, all small) --------------------------------------
    hs = hidden_states.astype(io_dtype)
    rs = residual_states.astype(io_dtype)

    # Conv1d weight (H_out, H_in, 3) -> (3, H_in, H_out), bf16 for the MXU.
    w_stk = jnp.transpose(w, (2, 1, 0)).astype(conv_dtype)             # (3, H, H)
    # conv bias / LN gamma / LN beta merged into a single (3, H) f32 operand.
    params = jnp.stack([b, gamma, beta], axis=0).astype(jnp.float32)   # (3, H)
    mask3 = input_mask.astype(jnp.float32).reshape(B, S, 1)

    # Per-tile halo *contributions*: (row just before the tile) @ W0 and
    # (row just after) @ W2; zeros at the true sequence ends (== conv zero padding).
    # Cost: 2 rows per tile -> ~2/(3*tS) of the main conv FLOPs, done once in XLA.
    zero_row = jnp.zeros((B, 1, H), dtype=io_dtype)
    prev_rows = jnp.concatenate([zero_row, hs[:, tS - 1:S - 1:tS, :]], axis=1)  # (B,nS,H)
    next_rows = jnp.concatenate([hs[:, tS:S:tS, :], zero_row], axis=1)          # (B,nS,H)
    hc0 = jnp.einsum('bnh,ho->bno', prev_rows.astype(conv_dtype), w_stk[0],
                     preferred_element_type=jnp.float32)
    hc2 = jnp.einsum('bnh,ho->bno', next_rows.astype(conv_dtype), w_stk[2],
                     preferred_element_type=jnp.float32)
    halo_contrib = jnp.stack([hc0, hc2], axis=2)                       # (B, nS, 2, H) f32

    # --- VMEM sizing / loud failure if nothing fits ------------------------
    act_tile = tS * H
    vmem_est = (2 * 3 * act_tile * io_isz      # hidden/residual/output, double-buffered
                + 2 * tS * lane * 4            # (tS,1) mask pads to 128 lanes in VMEM
                + 2 * 2 * max(H, lane) * 4     # halo contributions
                + w_bytes + p_bytes            # single-buffered weights / params
                + 8 * act_tile * 4)            # f32 working-set headroom
    if vmem_est > int(0.9 * vmem_cap):
        raise ValueError(
            f"ConvLayer Pallas kernel: no multiple-of-8 S-tile of S={S} fits VMEM "
            f"(need ~{vmem_est >> 20} MiB of ~{vmem_cap >> 20} MiB at H={H}); "
            f"pad S to a tileable length or reduce the tile budget.")
    vmem_limit = int(min(0.85 * vmem_cap, max(32 << 20, 1.3 * vmem_est)))

    grid_spec = pltpu.PrefetchScalarGridSpec(
        num_scalar_prefetch=0,
        grid=(B, nS),
        in_specs=[
            pl.BlockSpec((1, tS, H), lambda bi, si: (bi, si, 0)),       # hidden tile
            pl.BlockSpec((1, 1, 2, H), lambda bi, si: (bi, si, 0, 0)),  # halo contribs
            pl.BlockSpec((1, tS, H), lambda bi, si: (bi, si, 0)),       # residual tile
            pl.BlockSpec((1, tS, 1), lambda bi, si: (bi, si, 0)),       # input_mask
            pl.BlockSpec((3, H, H), lambda bi, si: (0, 0, 0),
                         pipeline_mode=pl.Buffered(1)),                 # conv weights
            pl.BlockSpec((3, H), lambda bi, si: (0, 0),
                         pipeline_mode=pl.Buffered(1)),                 # bias/gamma/beta
        ],
        out_specs=pl.BlockSpec((1, tS, H), lambda bi, si: (bi, si, 0)),
    )

    # Advisory cost estimate so XLA schedules neighbors sensibly.
    cost = pl.CostEstimate(
        flops=2 * 3 * B * S * H * H,
        transcendentals=B * S * H + 2 * B * S,
        bytes_accessed=int(3 * B * S * H * io_isz + B * S * 4
                           + B * nS * 2 * H * 4 + w_bytes + 3 * H * 4))

    return pl.pallas_call(
        conv_layer_kernel,
        out_shape=jax.ShapeDtypeStruct((B, S, H), io_dtype),
        grid_spec=grid_spec,
        compiler_params=pltpu.CompilerParams(
            dimension_semantics=("parallel", "parallel"),
            vmem_limit_bytes=vmem_limit),
        cost_estimate=cost,
    )(hs, halo_contrib, rs, mask3, w_stk, params)


def conv_layer_ref(hidden_states, residual_states, input_mask, w, b, gamma, beta,
                   io_dtype=jnp.bfloat16, conv_dtype=jnp.bfloat16):
    """Pure-JAX reference mirroring the PyTorch forward (eval mode), with the same
    I/O dtype at the boundary and bf16-operand / f32-accumulation conv matmuls."""
    B, S, H = hidden_states.shape
    io_dtype = jnp.dtype(io_dtype)
    hs = hidden_states.astype(io_dtype)
    rs = residual_states.astype(io_dtype)
    xpad = jnp.pad(hs, ((0, 0), (1, 1), (0, 0))).astype(conv_dtype)
    wt = jnp.transpose(w, (2, 1, 0)).astype(conv_dtype)
    out = (jnp.einsum('bsi,io->bso', xpad[:, 0:S], wt[0],
                      preferred_element_type=jnp.float32)
           + jnp.einsum('bsi,io->bso', xpad[:, 1:S + 1], wt[1],
                        preferred_element_type=jnp.float32)
           + jnp.einsum('bsi,io->bso', xpad[:, 2:S + 2], wt[2],
                        preferred_element_type=jnp.float32)
           + b.astype(jnp.float32))
    m = input_mask.astype(jnp.float32)[:, :, None]
    out = jnp.tanh(out * m)
    ln_in = rs.astype(jnp.float32) + out
    mu = jnp.mean(ln_in, axis=-1, keepdims=True)
    var = jnp.mean(jnp.square(ln_in - mu), axis=-1, keepdims=True)
    y = (ln_in - mu) * jax.lax.rsqrt(var + LN_EPS) * gamma + beta
    return (y * m).astype(io_dtype)


if __name__ == "__main__":
    key = jax.random.PRNGKey(0)

    def run_case(B, S, H, max_tile_s, io_dtype, tol):
        k_h, k_r, k_w, k_b = jax.random.split(jax.random.fold_in(key, S * 131 + H), 4)
        hidden = jax.random.normal(k_h, (B, S, H), dtype=jnp.float32)
        residual = jax.random.normal(k_r, (B, S, H), dtype=jnp.float32)
        # per-row valid lengths -> exercises the masking path
        lens = jnp.array([S, S - 3], dtype=jnp.int32)[:B]
        input_mask = (jnp.arange(S)[None, :] < lens[:, None]).astype(jnp.int32)

        # Deterministic synthetic parameters (torch Conv1d weight layout (H, H, 3)).
        w = 0.05 * jax.random.normal(k_w, (H, H, 3), dtype=jnp.float32)
        b = 0.01 * jax.random.normal(k_b, (H,), dtype=jnp.float32)
        gamma = jnp.ones((H,), dtype=jnp.float32)   # LayerNorm weight init
        beta = jnp.zeros((H,), dtype=jnp.float32)   # LayerNorm bias init

        out = conv_layer(hidden, residual, input_mask, w, b, gamma, beta,
                         io_dtype=io_dtype, max_tile_s=max_tile_s)
        out = jax.block_until_ready(out)
        ref = conv_layer_ref(hidden, residual, input_mask, w, b, gamma, beta,
                             io_dtype=io_dtype)
        assert out.shape == (B, S, H) and out.dtype == jnp.dtype(io_dtype)
        assert jnp.allclose(out.astype(jnp.float32), ref.astype(jnp.float32),
                            rtol=tol, atol=tol), \
            f"mismatch vs reference (B={B}, S={S}, H={H}, tile<={max_tile_s}, io={io_dtype})"

    # single S-tile per batch row, f32 I/O (tight tolerance)
    run_case(B=2, S=8, H=32, max_tile_s=512, io_dtype=jnp.float32, tol=1e-3)
    # multi-tile: exercises the halo / roll-patch path, bf16 I/O as on v6e
    run_case(B=2, S=16, H=32, max_tile_s=8, io_dtype=jnp.bfloat16, tol=2e-2)
    # multi-tile with f32 I/O (tight tolerance on the halo path)
    run_case(B=2, S=16, H=32, max_tile_s=8, io_dtype=jnp.float32, tol=1e-3)
    print("KERNEL_OK")
</pallas_src>

<mosaic_0001>
module attributes {stable_mosaic.version = 11 : i64} {
  func.func @conv_layer_kernel(%arg0: i32, %arg1: i32, %arg2: memref<1x8x32xf32, #tpu.memory_space<vmem>>, %arg3: memref<1x1x2x32xf32, #tpu.memory_space<vmem>>, %arg4: memref<1x8x32xf32, #tpu.memory_space<vmem>>, %arg5: memref<1x8x1xf32, #tpu.memory_space<vmem>>, %arg6: memref<3x32x32xbf16, #tpu.memory_space<vmem>>, %arg7: memref<3x32xf32, #tpu.memory_space<vmem>>, %arg8: memref<1x8x32xf32, #tpu.memory_space<vmem>>) attributes {dimension_semantics = [#tpu.dimension_semantics<parallel>, #tpu.dimension_semantics<parallel>], iteration_bounds = array<i64: 2, 1>, scalar_prefetch = 0 : i64, scratch_operands = 0 : i64, tpu.core_type = #tpu.core_type<tc>, window_params = [{transform_indices = @transform_0, window_bounds = array<i64: 1, 8, 32>}, {transform_indices = @transform_1, window_bounds = array<i64: 1, 1, 2, 32>}, {transform_indices = @transform_2, window_bounds = array<i64: 1, 8, 32>}, {transform_indices = @transform_3, window_bounds = array<i64: 1, 8, 1>}, {pipeline_mode = #tpu.pipeline_mode<synchronous>, transform_indices = @transform_4, window_bounds = array<i64: 3, 32, 32>}, {pipeline_mode = #tpu.pipeline_mode<synchronous>, transform_indices = @transform_5, window_bounds = array<i64: 3, 32>}, {transform_indices = @transform_6, window_bounds = array<i64: 1, 8, 32>}]} {
    %c0 = arith.constant 0 : index
    %c0_0 = arith.constant 0 : index
    %c0_1 = arith.constant 0 : index
    %0 = vector.load %arg2[%c0, %c0_0, %c0_1] : memref<1x8x32xf32, #tpu.memory_space<vmem>>, vector<1x8x32xf32>
    %1 = vector.shape_cast %0 : vector<1x8x32xf32> to vector<8x32xf32>
    %2 = arith.truncf %1 : vector<8x32xf32> to vector<8x32xbf16>
    %c0_2 = arith.constant 0 : index
    %c0_3 = arith.constant 0 : index
    %c0_4 = arith.constant 0 : index
    %c0_5 = arith.constant 0 : index
    %3 = vector.load %arg3[%c0_2, %c0_3, %c0_4, %c0_5] : memref<1x1x2x32xf32, #tpu.memory_space<vmem>>, vector<1x1x2x32xf32>
    %4 = vector.shape_cast %3 : vector<1x1x2x32xf32> to vector<2x32xf32>
    %c0_6 = arith.constant 0 : index
    %c0_7 = arith.constant 0 : index
    %c0_8 = arith.constant 0 : index
    %5 = vector.load %arg5[%c0_6, %c0_7, %c0_8] : memref<1x8x1xf32, #tpu.memory_space<vmem>>, vector<1x8x1xf32>
    %6 = vector.shape_cast %5 : vector<1x8x1xf32> to vector<8x1xf32>
    %7 = vector.shape_cast %6 : vector<8x1xf32> to vector<8x1xf32>
    %8 = vector.broadcast %7 : vector<8x1xf32> to vector<8x32xf32>
    %c0_9 = arith.constant 0 : index
    %c0_10 = arith.constant 0 : index
    %c0_11 = arith.constant 0 : index
    %9 = vector.load %arg6[%c0_9, %c0_10, %c0_11] : memref<3x32x32xbf16, #tpu.memory_space<vmem>>, vector<1x32x32xbf16>
    %10 = vector.shape_cast %9 : vector<1x32x32xbf16> to vector<32x32xbf16>
    %cst = arith.constant dense<0.000000e+00> : vector<8x32xf32>
    %11 = tpu.matmul %2, %10, %cst {dimension_numbers = #tpu.dot_dimension_numbers<[1], [0], [0], [1], [0, 0, 1, 1], [], []>} : vector<8x32xbf16>, vector<32x32xbf16>, vector<8x32xf32> -> vector<8x32xf32>
    %c1 = arith.constant 1 : index
    %c0_12 = arith.constant 0 : index
    %c0_13 = arith.constant 0 : index
    %12 = vector.load %arg6[%c1, %c0_12, %c0_13] : memref<3x32x32xbf16, #tpu.memory_space<vmem>>, vector<1x32x32xbf16>
    %13 = vector.shape_cast %12 : vector<1x32x32xbf16> to vector<32x32xbf16>
    %cst_14 = arith.constant dense<0.000000e+00> : vector<8x32xf32>
    %14 = tpu.matmul %2, %13, %cst_14 {dimension_numbers = #tpu.dot_dimension_numbers<[1], [0], [0], [1], [0, 0, 1, 1], [], []>} : vector<8x32xbf16>, vector<32x32xbf16>, vector<8x32xf32> -> vector<8x32xf32>
    %c2 = arith.constant 2 : index
    %c0_15 = arith.constant 0 : index
    %c0_16 = arith.constant 0 : index
    %15 = vector.load %arg6[%c2, %c0_15, %c0_16] : memref<3x32x32xbf16, #tpu.memory_space<vmem>>, vector<1x32x32xbf16>
    %16 = vector.shape_cast %15 : vector<1x32x32xbf16> to vector<32x32xbf16>
    %cst_17 = arith.constant dense<0.000000e+00> : vector<8x32xf32>
    %17 = tpu.matmul %2, %16, %cst_17 {dimension_numbers = #tpu.dot_dimension_numbers<[1], [0], [0], [1], [0, 0, 1, 1], [], []>} : vector<8x32xbf16>, vector<32x32xbf16>, vector<8x32xf32> -> vector<8x32xf32>
    %18 = tpu.iota {dimensions = array<i32: 0>} : vector<8x1xi32>
    %c0_i32 = arith.constant 0 : i32
    %19 = vector.broadcast %c0_i32 : i32 to vector<8x1xi32>
    %20 = arith.cmpi eq, %18, %19 : vector<8x1xi32>
    %21 = vector.extract_strided_slice %4 {offsets = [0, 0], sizes = [1, 32], strides = [1, 1]} : vector<2x32xf32> to vector<1x32xf32>
    %c1_i32 = arith.constant 1 : i32
    %22 = tpu.dynamic_rotate %11 by %c1_i32 dim 0 : vector<8x32xf32>, i32 -> vector<8x32xf32>
    %23 = vector.shape_cast %20 : vector<8x1xi1> to vector<8x1xi1>
    %24 = vector.broadcast %23 : vector<8x1xi1> to vector<8x32xi1>
    %25 = vector.shape_cast %21 : vector<1x32xf32> to vector<1x32xf32>
    %26 = vector.broadcast %25 : vector<1x32xf32> to vector<8x32xf32>
    %27 = arith.select %24, %26, %22 : vector<8x32xi1>, vector<8x32xf32>
    %c7_i32 = arith.constant 7 : i32
    %28 = vector.broadcast %c7_i32 : i32 to vector<8x1xi32>
    %29 = arith.cmpi eq, %18, %28 : vector<8x1xi32>
    %30 = vector.extract_strided_slice %4 {offsets = [1, 0], sizes = [1, 32], strides = [1, 1]} : vector<2x32xf32> to vector<1x32xf32>
    %c7_i32_18 = arith.constant 7 : i32
    %31 = tpu.dynamic_rotate %17 by %c7_i32_18 dim 0 : vector<8x32xf32>, i32 -> vector<8x32xf32>
    %32 = vector.shape_cast %29 : vector<8x1xi1> to vector<8x1xi1>
    %33 = vector.broadcast %32 : vector<8x1xi1> to vector<8x32xi1>
    %34 = vector.shape_cast %30 : vector<1x32xf32> to vector<1x32xf32>
    %35 = vector.broadcast %34 : vector<1x32xf32> to vector<8x32xf32>
    %36 = arith.select %33, %35, %31 : vector<8x32xi1>, vector<8x32xf32>
    %c0_19 = arith.constant 0 : index
    %c0_20 = arith.constant 0 : index
    %37 = vector.load %arg7[%c0_19, %c0_20] : memref<3x32xf32, #tpu.memory_space<vmem>>, vector<3x32xf32>
    %38 = arith.addf %14, %27 : vector<8x32xf32>
    %39 = arith.addf %38, %36 : vector<8x32xf32>
    %40 = vector.extract_strided_slice %37 {offsets = [0, 0], sizes = [1, 32], strides = [1, 1]} : vector<3x32xf32> to vector<1x32xf32>
    %41 = vector.broadcast %40 : vector<1x32xf32> to vector<8x32xf32>
    %42 = arith.addf %39, %41 : vector<8x32xf32>
    %43 = arith.mulf %42, %8 : vector<8x32xf32>
    %44 = math.tanh %43 : vector<8x32xf32>
    %c0_21 = arith.constant 0 : index
    %c0_22 = arith.constant 0 : index
    %c0_23 = arith.constant 0 : index
    %45 = vector.load %arg4[%c0_21, %c0_22, %c0_23] : memref<1x8x32xf32, #tpu.memory_space<vmem>>, vector<1x8x32xf32>
    %46 = vector.shape_cast %45 : vector<1x8x32xf32> to vector<8x32xf32>
    %47 = arith.addf %46, %44 : vector<8x32xf32>
    %cst_24 = arith.constant dense<0.000000e+00> : vector<8xf32>
    %48 = vector.multi_reduction <add>, %47, %cst_24 [1] : vector<8x32xf32> to vector<8xf32>
    %49 = vector.shape_cast %48 : vector<8xf32> to vector<8x1xf32>
    %cst_25 = arith.constant 3.200000e+01 : f32
    %50 = vector.broadcast %cst_25 : f32 to vector<8x1xf32>
    %51 = arith.divf %49, %50 : vector<8x1xf32>
    %52 = arith.mulf %47, %47 : vector<8x32xf32>
    %cst_26 = arith.constant dense<0.000000e+00> : vector<8xf32>
    %53 = vector.multi_reduction <add>, %52, %cst_26 [1] : vector<8x32xf32> to vector<8xf32>
    %54 = vector.shape_cast %53 : vector<8xf32> to vector<8x1xf32>
    %cst_27 = arith.constant 3.200000e+01 : f32
    %55 = vector.broadcast %cst_27 : f32 to vector<8x1xf32>
    %56 = arith.divf %54, %55 : vector<8x1xf32>
    %57 = arith.mulf %51, %51 : vector<8x1xf32>
    %58 = arith.subf %56, %57 : vector<8x1xf32>
    %cst_28 = arith.constant 0.000000e+00 : f32
    %59 = vector.broadcast %cst_28 : f32 to vector<8x1xf32>
    %60 = arith.maximumf %58, %59 : vector<8x1xf32>
    %61 = vector.broadcast %51 : vector<8x1xf32> to vector<8x32xf32>
    %62 = arith.subf %47, %61 : vector<8x32xf32>
    %cst_29 = arith.constant 1.000000e-07 : f32
    %63 = vector.broadcast %cst_29 : f32 to vector<8x1xf32>
    %64 = arith.addf %60, %63 : vector<8x1xf32>
    %65 = math.rsqrt %64 : vector<8x1xf32>
    %66 = vector.broadcast %65 : vector<8x1xf32> to vector<8x32xf32>
    %67 = arith.mulf %62, %66 : vector<8x32xf32>
    %68 = vector.extract_strided_slice %37 {offsets = [1, 0], sizes = [1, 32], strides = [1, 1]} : vector<3x32xf32> to vector<1x32xf32>
    %69 = vector.broadcast %68 : vector<1x32xf32> to vector<8x32xf32>
    %70 = arith.mulf %67, %69 : vector<8x32xf32>
    %71 = vector.extract_strided_slice %37 {offsets = [2, 0], sizes = [1, 32], strides = [1, 1]} : vector<3x32xf32> to vector<1x32xf32>
    %72 = vector.broadcast %71 : vector<1x32xf32> to vector<8x32xf32>
    %73 = arith.addf %70, %72 : vector<8x32xf32>
    %74 = arith.mulf %73, %8 : vector<8x32xf32>
    %c0_30 = arith.constant 0 : index
    %c0_31 = arith.constant 0 : index
    %c0_32 = arith.constant 0 : index
    %75 = vector.load %arg8[%c0_30, %c0_31, %c0_32] : memref<1x8x32xf32, #tpu.memory_space<vmem>>, vector<1x8x32xf32>
    %76 = vector.shape_cast %75 : vector<1x8x32xf32> to vector<8x32xf32>
    %77 = vector.shape_cast %74 : vector<8x32xf32> to vector<1x8x32xf32>
    tpu.vector_store %arg8[%c0_30, %c0_31, %c0_32], %77 {strides = array<i32>} : memref<1x8x32xf32, #tpu.memory_space<vmem>>, vector<1x8x32xf32>,
    return
  }
  func.func @transform_0(%arg0: i32, %arg1: i32) -> (i32, i32, i32) {
    %c0_i32 = arith.constant 0 : i32
    %c0_i32_0 = arith.constant 0 : i32
    return %arg0, %arg1, %c0_i32 : i32, i32, i32
  }
  func.func @transform_1(%arg0: i32, %arg1: i32) -> (i32, i32, i32, i32) {
    %c0_i32 = arith.constant 0 : i32
    %c0_i32_0 = arith.constant 0 : i32
    %c0_i32_1 = arith.constant 0 : i32
    return %arg0, %arg1, %c0_i32, %c0_i32_0 : i32, i32, i32, i32
  }
  func.func @transform_2(%arg0: i32, %arg1: i32) -> (i32, i32, i32) {
    %c0_i32 = arith.constant 0 : i32
    %c0_i32_0 = arith.constant 0 : i32
    return %arg0, %arg1, %c0_i32 : i32, i32, i32
  }
  func.func @transform_3(%arg0: i32, %arg1: i32) -> (i32, i32, i32) {
    %c0_i32 = arith.constant 0 : i32
    %c0_i32_0 = arith.constant 0 : i32
    return %arg0, %arg1, %c0_i32 : i32, i32, i32
  }
  func.func @transform_4(%arg0: i32, %arg1: i32) -> (i32, i32, i32) {
    %c0_i32 = arith.constant 0 : i32
    %c0_i32_0 = arith.constant 0 : i32
    %c0_i32_1 = arith.constant 0 : i32
    %c0_i32_2 = arith.constant 0 : i32
    return %c0_i32, %c0_i32_0, %c0_i32_1 : i32, i32, i32
  }
  func.func @transform_5(%arg0: i32, %arg1: i32) -> (i32, i32) {
    %c0_i32 = arith.constant 0 : i32
    %c0_i32_0 = arith.constant 0 : i32
    %c0_i32_1 = arith.constant 0 : i32
    return %c0_i32, %c0_i32_0 : i32, i32
  }
  func.func @transform_6(%arg0: i32, %arg1: i32) -> (i32, i32, i32) {
    %c0_i32 = arith.constant 0 : i32
    %c0_i32_0 = arith.constant 0 : i32
    return %arg0, %arg1, %c0_i32 : i32, i32, i32
  }
}

</mosaic_0001>

<llo_original>
// kernel: tpu_custom_call.1
$region0: #{tpu_custom_call.1}
  #allocation0 [shape = 'u32[]', space=smem, size = 0x4, offset = 0x4, fixed_abs, tag = 'smem constant byte address 0x4 - core index']
  #allocation1 [shape = 'u32[144,128]{1,0:T(1,128)}', space=vmem, size = 0x12000, scoped, tag = 'internal scratch']
  %s0 = inlined_call_operand.vmem [shape: f32[2,8,32], index: 0, kind: input, shape index: {}]
  %s1 = inlined_call_operand.vmem [shape: f32[2,1,2,32], index: 1, kind: input, shape index: {}]
  %s2 = inlined_call_operand.hbm [shape: f32[2,8,32], index: 2, kind: input, shape index: {}]
  %s3 = inlined_call_operand.vmem [shape: f32[2,8,1], index: 3, kind: input, shape index: {}]
  %s4 = inlined_call_operand.hbm [shape: bf16[3,32,32], index: 4, kind: input, shape index: {}]
  %s5 = inlined_call_operand.vmem [shape: f32[3,32], index: 5, kind: input, shape index: {}]
  %s6 = inlined_call_operand.hbm [shape: f32[2,8,32], index: 6, kind: output, shape index: {}]
  %s7 = sld [smem:[#allocation0]]
  $region65: #{tpu_custom_call.1} parent=0
    _
  %s9 = ssub.s32 1, %s7
  %s10 = scalar_select 0, %s9, %s7
  $region1: #{tpu_custom_call.1} parent=0
    #allocation2 [shape = 'u8[8192]{0}', space=vmem, size = 0x2000, scoped, tag = 'input window, operand 2']
    #allocation3 [shape = 's32[2]{0}', space=sflag, size = 0x8, scoped, tag = 'scoped memory for tpu_custom_call.1']
    #allocation4 [shape = 's32[2]{0}', space=sflag, size = 0x8, scoped, tag = 'scoped memory for tpu_custom_call.1']
    #allocation5 [shape = 'u8[24576]{0}', space=vmem, size = 0x6000, scoped, tag = 'input window, operand 4, single buffered']
    #allocation6 [shape = 's32[1]{0}', space=sflag, size = 0x4, scoped, tag = 'scoped memory for tpu_custom_call.1']
    #allocation7 [shape = 'u8[8192]{0}', space=vmem, size = 0x2000, scoped, tag = 'output window, operand 0']
    %11 = vsyncpa [#allocation3], 0
    %s12 = scalar_lea.sflag [#allocation3], 1
    %13 = vsyncpa %s12, 0
    %14 = vsyncpa [#allocation6], 0
    %15 = vsyncpa [#allocation4], 0
    %s16 = scalar_lea.sflag [#allocation4], 1
    %17 = vsyncpa %s16, 0
    loop: start=0, step=1, limit=4
    $region2: #{tpu_custom_call.1} parent=1 // loop_pre_header
      _
    $region3: #{tpu_custom_call.1} parent=1 // loop_header
      %s19 = sphi 0, %s23
      %p20 = scmp.ge.s32.totalorder %s19, 4
      %s26 = sphi 0, %s38
      %s27 = sphi 0, %s34
      %s28 = sphi 0, %s26
      %s29 = sphi 0, %s27
      %s30 = sphi 0, %s28
      %s31 = sphi 0, %s29
      %s43 = sphi 0, %s45
      %s46 = sphi 0, %s43
      %s47 = sphi 0, %s46
      %s63 = sphi 0, %s47
      %s71 = sphi 0, %s73
      %s74 = sphi 0, %s71
      %s75 = sphi 0, %s74
      %s91 = sphi 0, %s75
      %s99 = sphi 0, %s101
      %s102 = sphi 0, %s99
      %s103 = sphi 0, %s102
      %s119 = sphi 0, %s103
      %s127 = sphi 0, %s129
      %s130 = sphi 0, %s127
      %s131 = sphi 0, %s130
      %s147 = sphi 0, %s131
      %s151 = sphi 0, %s151
      %s153 = sphi 0, %s151
      %s154 = sphi 0, %s153
      %s168 = sphi 0, %s154
      %s172 = sphi 0, %s172
      %s174 = sphi 0, %s172
      %s175 = sphi 0, %s174
      %s189 = sphi 0, %s175
      %s197 = sphi 0, %s199
      %s200 = sphi 0, %s197
      %s201 = sphi 0, %s200
      %s217 = sphi 0, %s201
    $region4: #{tpu_custom_call.1} parent=1 // loop_header_branch
      %22 = sbr.rel (%p20) target = $region8
    $region5: #{tpu_custom_call.1} parent=1 // loop_body
      %s24 = ssub.s32 %s19, 1
      %s25 = ssub.s32 %s19, 2
      %s32 = sadd.s32 1, %s27
      %p33 = scmp.ge.s32.totalorder %s32, 1
      %s34 = scalar_select %p33, 0, %s32
      %s35 = sadd.s32 1, %s26
      %s36 = scalar_select %p33, %s35, %s26
      %p37 = scmp.ge.s32.totalorder %s36, 2
      %s38 = scalar_select %p37, 0, %s36
      %s39 = ssub.s32 %s26, %s38
      %s40 = ssub.s32 %s27, %s34
      %s41 = sor.u32 %s39, %s40
      %p42 = scmp.eq.s32.totalorder %s41, 0
      %s44 = sadd.s32 %s43, 1
      %s45 = scalar_select %p42, %s43, %s44
      %p48 = pneg %p42
      %p49 = scmp.eq.s32.totalorder %s19, 1
      %p50 = por %p48, %p49
      %p51 = scmp.ne.s32.totalorder %s43, %s46
      %p52 = scmp.eq.s32.totalorder %s19, 0
      %p53 = por %p51, %p52
      %p54 = scmp.ne.s32.totalorder %s43, %s46
      %p55 = scmp.eq.s32.totalorder %s24, 1
      %p56 = por %p54, %p55
      %p57 = scmp.ne.s32.totalorder %s46, %s47
      %p58 = scmp.eq.s32.totalorder %s24, 0
      %p59 = por %p57, %p58
      %p60 = scmp.ne.s32.totalorder %s46, %s47
      %p61 = scmp.eq.s32.totalorder %s25, 1
      %p62 = por %p60, %p61
      %p64 = scmp.ne.s32.totalorder %s47, %s63
      %p65 = scmp.eq.s32.totalorder %s25, 0
      %p66 = por %p64, %p65
      %s67 = ssub.s32 %s26, %s38
      %s68 = ssub.s32 %s27, %s34
      %s69 = sor.u32 %s67, %s68
      %p70 = scmp.eq.s32.totalorder %s69, 0
      %s72 = sadd.s32 %s71, 1
      %s73 = scalar_select %p70, %s71, %s72
      %p76 = pneg %p70
      %p77 = scmp.eq.s32.totalorder %s19, 1
      %p78 = por %p76, %p77
      %p79 = scmp.ne.s32.totalorder %s71, %s74
      %p80 = scmp.eq.s32.totalorder %s19, 0
      %p81 = por %p79, %p80
      %p82 = scmp.ne.s32.totalorder %s71, %s74
      %p83 = scmp.eq.s32.totalorder %s24, 1
      %p84 = por %p82, %p83
      %p85 = scmp.ne.s32.totalorder %s74, %s75
      %p86 = scmp.eq.s32.totalorder %s24, 0
      %p87 = por %p85, %p86
      %p88 = scmp.ne.s32.totalorder %s74, %s75
      %p89 = scmp.eq.s32.totalorder %s25, 1
      %p90 = por %p88, %p89
      %p92 = scmp.ne.s32.totalorder %s75, %s91
      %p93 = scmp.eq.s32.totalorder %s25, 0
      %p94 = por %p92, %p93
      %s95 = ssub.s32 %s26, %s38
      %s96 = ssub.s32 %s27, %s34
      %s97 = sor.u32 %s95, %s96
      %p98 = scmp.eq.s32.totalorder %s97, 0
      %s100 = sadd.s32 %s99, 1
      %s101 = scalar_select %p98, %s99, %s100
      %p104 = pneg %p98
      %p105 = scmp.eq.s32.totalorder %s19, 1
      %p106 = por %p104, %p105
      %p107 = scmp.ne.s32.totalorder %s99, %s102
      %p108 = scmp.eq.s32.totalorder %s19, 0
      %p109 = por %p107, %p108
      %p110 = scmp.ne.s32.totalorder %s99, %s102
      %p111 = scmp.eq.s32.totalorder %s24, 1
      %p112 = por %p110, %p111
      %p113 = scmp.ne.s32.totalorder %s102, %s103
      %p114 = scmp.eq.s32.totalorder %s24, 0
      %p115 = por %p113, %p114
      %p116 = scmp.ne.s32.totalorder %s102, %s103
      %p117 = scmp.eq.s32.totalorder %s25, 1
      %p118 = por %p116, %p117
      %p120 = scmp.ne.s32.totalorder %s103, %s119
      %p121 = scmp.eq.s32.totalorder %s25, 0
      %p122 = por %p120, %p121
      %s123 = ssub.s32 %s26, %s38
      %s124 = ssub.s32 %s27, %s34
      %s125 = sor.u32 %s123, %s124
      %p126 = scmp.eq.s32.totalorder %s125, 0
      %s128 = sadd.s32 %s127, 1
      %s129 = scalar_select %p126, %s127, %s128
      %p132 = pneg %p126
      %p133 = scmp.eq.s32.totalorder %s19, 1
      %p134 = por %p132, %p133
      %p135 = scmp.ne.s32.totalorder %s127, %s130
      %p136 = scmp.eq.s32.totalorder %s19, 0
      %p137 = por %p135, %p136
      %p138 = scmp.ne.s32.totalorder %s127, %s130
      %p139 = scmp.eq.s32.totalorder %s24, 1
      %p140 = por %p138, %p139
      %p141 = scmp.ne.s32.totalorder %s130, %s131
      %p142 = scmp.eq.s32.totalorder %s24, 0
      %p143 = por %p141, %p142
      %p144 = scmp.ne.s32.totalorder %s130, %s131
      %p145 = scmp.eq.s32.totalorder %s25, 1
      %p146 = por %p144, %p145
      %p148 = scmp.ne.s32.totalorder %s131, %s147
      %p149 = scmp.eq.s32.totalorder %s25, 0
      %p150 = por %p148, %p149
      %s152 = sadd.s32 %s151, 1
      %p155 = scmp.eq.s32.totalorder %s19, 1
      %p156 = scmp.ne.s32.totalorder %s151, %s153
      %p157 = scmp.eq.s32.totalorder %s19, 0
      %p158 = por %p156, %p157
      %p159 = scmp.ne.s32.totalorder %s151, %s153
      %p160 = scmp.eq.s32.totalorder %s24, 1
      %p161 = por %p159, %p160
      %p162 = scmp.ne.s32.totalorder %s153, %s154
      %p163 = scmp.eq.s32.totalorder %s24, 0
      %p164 = por %p162, %p163
      %p165 = scmp.ne.s32.totalorder %s153, %s154
      %p166 = scmp.eq.s32.totalorder %s25, 1
      %p167 = por %p165, %p166
      %p169 = scmp.ne.s32.totalorder %s154, %s168
      %p170 = scmp.eq.s32.totalorder %s25, 0
      %p171 = por %p169, %p170
      %s173 = sadd.s32 %s172, 1
      %p176 = scmp.eq.s32.totalorder %s19, 1
      %p177 = scmp.ne.s32.totalorder %s172, %s174
      %p178 = scmp.eq.s32.totalorder %s19, 0
      %p179 = por %p177, %p178
      %p180 = scmp.ne.s32.totalorder %s172, %s174
      %p181 = scmp.eq.s32.totalorder %s24, 1
      %p182 = por %p180, %p181
      %p183 = scmp.ne.s32.totalorder %s174, %s175
      %p184 = scmp.eq.s32.totalorder %s24, 0
      %p185 = por %p183, %p184
      %p186 = scmp.ne.s32.totalorder %s174, %s175
      %p187 = scmp.eq.s32.totalorder %s25, 1
      %p188 = por %p186, %p187
      %p190 = scmp.ne.s32.totalorder %s175, %s189
      %p191 = scmp.eq.s32.totalorder %s25, 0
      %p192 = por %p190, %p191
      %s193 = ssub.s32 %s26, %s38
      %s194 = ssub.s32 %s27, %s34
      %s195 = sor.u32 %s193, %s194
      %p196 = scmp.eq.s32.totalorder %s195, 0
      %s198 = sadd.s32 %s197, 1
      %s199 = scalar_select %p196, %s197, %s198
      %p202 = pneg %p196
      %p203 = scmp.eq.s32.totalorder %s19, 1
      %p204 = por %p202, %p203
      %p205 = scmp.ne.s32.totalorder %s197, %s200
      %p206 = scmp.eq.s32.totalorder %s19, 0
      %p207 = por %p205, %p206
      %p208 = scmp.ne.s32.totalorder %s197, %s200
      %p209 = scmp.eq.s32.totalorder %s24, 1
      %p210 = por %p208, %p209
      %p211 = scmp.ne.s32.totalorder %s200, %s201
      %p212 = scmp.eq.s32.totalorder %s24, 0
      %p213 = por %p211, %p212
      %p214 = scmp.ne.s32.totalorder %s200, %s201
      %p215 = scmp.eq.s32.totalorder %s25, 1
      %p216 = por %p214, %p215
      %p218 = scmp.ne.s32.totalorder %s201, %s217
      %p219 = scmp.eq.s32.totalorder %s25, 0
      %p220 = por %p218, %p219
      %p221 = scmp.le.s32.totalorder 1, %s19
      %p222 = scmp.lt.s32.totalorder %s19, 3
      %p223 = pnand %p221, %p222
      %p224 = pneg %p223
      // Predicated region
      $region9: #{tpu_custom_call.1} parent=5 // pred_check
        _
      $region10: #{tpu_custom_call.1} parent=5 // pred_check_branch
        %226 = sbr.rel (%p223) target = $region12
      $region11: #{tpu_custom_call.1} parent=5 // pred_region
        %s227 = ssub.s32 %s19, 1
        // Predicated region
        $region13: #{tpu_custom_call.1} parent=11 // pred_check
          %p228 = pneg %p164
        $region14: #{tpu_custom_call.1} parent=11 // pred_check_branch
          %230 = sbr.rel (%p228) target = $region16
        $region15: #{tpu_custom_call.1} parent=11 // pred_region
          %s232 = ssub.s32 768, 768
          %233 = vsyncadd [#allocation6], %s232
          %s234 = sshll.u32 [#allocation5], 4
          %s235 = int_to_ptr.vmem [resolvable:$true] %s234
          %240 = dma.hbm_to_vmem [thread:$0]  %s4, 768, %s235, [#allocation6], 64, 64, 4
        $region16: #{tpu_custom_call.1} parent=11 // pred_fallthru
          _
        // Predicated region
        $region17: #{tpu_custom_call.1} parent=11 // pred_check
          %p241 = pneg %p185
        $region18: #{tpu_custom_call.1} parent=11 // pred_check_branch
          %243 = sbr.rel (%p241) target = $region20
        $region19: #{tpu_custom_call.1} parent=11 // pred_region
          _
        $region20: #{tpu_custom_call.1} parent=11 // pred_fallthru
          _
      $region12: #{tpu_custom_call.1} parent=5 // pred_fallthru
        _
      %p244 = scmp.lt.s32.totalorder %s19, 2
      // Predicated region
      $region21: #{tpu_custom_call.1} parent=5 // pred_check
        %p245 = pneg %p244
      $region22: #{tpu_custom_call.1} parent=5 // pred_check_branch
        %247 = sbr.rel (%p245) target = $region24
      $region23: #{tpu_custom_call.1} parent=5 // pred_region
        // Predicated region
        $region25: #{tpu_custom_call.1} parent=23 // pred_check
          %p248 = pneg %p53
        $region26: #{tpu_custom_call.1} parent=23 // pred_check_branch
          %250 = sbr.rel (%p248) target = $region28
        $region27: #{tpu_custom_call.1} parent=23 // pred_region
          %p251 = scmp.lt.s32.totalorder %s26, 1
          %s252 = scalar_select %p251, %s26, 1
          %p253 = scmp.lt.s32.totalorder %s27, 0
          %s254 = scalar_select %p253, %s27, 0
          %s255 = sadd.s32 %s254, %s252
          %s256 = smul.addr %s255, 8
          %s257 = scalar_lea.vmem %s0, %s256
        $region28: #{tpu_custom_call.1} parent=23 // pred_fallthru
          _
        // Predicated region
        $region29: #{tpu_custom_call.1} parent=23 // pred_check
          %p258 = pneg %p81
        $region30: #{tpu_custom_call.1} parent=23 // pred_check_branch
          %260 = sbr.rel (%p258) target = $region32
        $region31: #{tpu_custom_call.1} parent=23 // pred_region
          %p261 = scmp.lt.s32.totalorder %s26, 1
          %s262 = scalar_select %p261, %s26, 1
          %p263 = scmp.lt.s32.totalorder %s27, 0
          %s264 = scalar_select %p263, %s27, 0
          %s265 = sadd.s32 %s264, %s262
          %s266 = smul.addr %s265, 2
          %s267 = scalar_lea.vmem %s1, %s266
        $region32: #{tpu_custom_call.1} parent=23 // pred_fallthru
          _
        // Predicated region
        $region33: #{tpu_custom_call.1} parent=23 // pred_check
          %p268 = pneg %p109
        $region34: #{tpu_custom_call.1} parent=23 // pred_check_branch
          %270 = sbr.rel (%p268) target = $region36
        $region35: #{tpu_custom_call.1} parent=23 // pred_region
          %s271 = sand.u32 %s99, 1
          %s272 = scalar_lea.sflag [#allocation3], %s271
          %s273 = sand.u32 %s99, 1
          %s274 = smul.addr %s273, 8
          %s275 = scalar_lea.vmem [#allocation2], %s274
          %s277 = ssub.s32 128, 128
          %278 = vsyncadd %s272, %s277
          %s279 = sadd.s32 %s27, %s26
          %s280 = smul.addr %s279, 128
          %s281 = scalar_lea.hbm %s2, %s280
          %s283 = sshll.u32 %s275, 4
          %s284 = int_to_ptr.vmem [resolvable:$true] %s283
          %286 = dma.hbm_to_vmem [thread:$0]  %s281, 128, %s284, %s272
        $region36: #{tpu_custom_call.1} parent=23 // pred_fallthru
          _
        // Predicated region
        $region37: #{tpu_custom_call.1} parent=23 // pred_check
          %p287 = pneg %p137
        $region38: #{tpu_custom_call.1} parent=23 // pred_check_branch
          %289 = sbr.rel (%p287) target = $region40
        $region39: #{tpu_custom_call.1} parent=23 // pred_region
          %p290 = scmp.lt.s32.totalorder %s26, 1
          %s291 = scalar_select %p290, %s26, 1
          %p292 = scmp.lt.s32.totalorder %s27, 0
          %s293 = scalar_select %p292, %s27, 0
          %s294 = sadd.s32 %s293, %s291
          %s295 = smul.addr %s294, 8
          %s296 = scalar_lea.vmem %s3, %s295
        $region40: #{tpu_custom_call.1} parent=23 // pred_fallthru
          _
      $region24: #{tpu_custom_call.1} parent=5 // pred_fallthru
        _
      %p297 = scmp.le.s32.totalorder 1, %s19
      %p298 = scmp.lt.s32.totalorder %s19, 3
      %p299 = pnand %p297, %p298
      %p300 = pneg %p299
      // Predicated region
      $region41: #{tpu_custom_call.1} parent=5 // pred_check
        _
      $region42: #{tpu_custom_call.1} parent=5 // pred_check_branch
        %302 = sbr.rel (%p299) target = $region44
      $region43: #{tpu_custom_call.1} parent=5 // pred_region
        %s303 = ssub.s32 %s19, 1
        %s304 = sand.u32 %s102, 1
        %s305 = scalar_lea.sflag [#allocation3], %s304
        %s306 = sand.u32 %s102, 1
        %s307 = smul.addr %s306, 8
        %s308 = scalar_lea.vmem [#allocation2], %s307
        // Predicated region
        $region45: #{tpu_custom_call.1} parent=43 // pred_check
          %p309 = pneg %p115
        $region46: #{tpu_custom_call.1} parent=43 // pred_check_branch
          %311 = sbr.rel (%p309) target = $region48
        $region47: #{tpu_custom_call.1} parent=43 // pred_region
          %312 = dma.done %s305, 128
        $region48: #{tpu_custom_call.1} parent=43 // pred_fallthru
          _
        // Predicated region
        $region49: #{tpu_custom_call.1} parent=43 // pred_check
          %p313 = pneg %p164
        $region50: #{tpu_custom_call.1} parent=43 // pred_check_branch
          %315 = sbr.rel (%p313) target = $region52
        $region51: #{tpu_custom_call.1} parent=43 // pred_region
          %316 = dma.done [#allocation6], 768
        $region52: #{tpu_custom_call.1} parent=43 // pred_fallthru
          _
        %p317 = scmp.lt.s32.totalorder %s28, 1
        %s318 = scalar_select %p317, %s28, 1
        %p319 = scmp.lt.s32.totalorder %s29, 0
        %s320 = scalar_select %p319, %s29, 0
        %s321 = sadd.s32 %s320, %s318
        %s322 = smul.addr %s321, 8
        %s323 = scalar_lea.vmem %s0, %s322
        %p324 = pneg %p59
        %p325 = pneg %p56
        %p326 = scmp.lt.s32.totalorder %s28, 1
        %s327 = scalar_select %p326, %s28, 1
        %p328 = scmp.lt.s32.totalorder %s29, 0
        %s329 = scalar_select %p328, %s29, 0
        %s330 = sadd.s32 %s329, %s327
        %s331 = smul.addr %s330, 2
        %s332 = scalar_lea.vmem %s1, %s331
        %p333 = pneg %p87
        %p334 = pneg %p84
        %s335 = sand.u32 %s102, 1
        %s336 = scalar_lea.sflag [#allocation3], %s335
        %s337 = sand.u32 %s102, 1
        %s338 = smul.addr %s337, 8
        %s339 = scalar_lea.vmem [#allocation2], %s338
        %p340 = pneg %p115
        %p341 = pneg %p112
        %p342 = scmp.lt.s32.totalorder %s28, 1
        %s343 = scalar_select %p342, %s28, 1
        %p344 = scmp.lt.s32.totalorder %s29, 0
        %s345 = scalar_select %p344, %s29, 0
        %s346 = sadd.s32 %s345, %s343
        %s347 = smul.addr %s346, 8
        %s348 = scalar_lea.vmem %s3, %s347
        %p349 = pneg %p143
        %p350 = pneg %p140
        %p351 = pneg %p164
        %p352 = pneg %p161
        %p353 = pneg %p185
        %p354 = pneg %p182
        %p355 = pneg %p213
        %p356 = pneg %p210
        %s357 = sand.u32 %s200, 1
        %s358 = scalar_lea.sflag [#allocation4], %s357
        %s359 = sand.u32 %s200, 1
        %s360 = smul.addr %s359, 8
        %s361 = scalar_lea.vmem [#allocation7], %s360
        %p362 = scmp.lt.s32.totalorder %s28, 1
        %s363 = scalar_select %p362, %s28, 1
        %p364 = scmp.lt.s32.totalorder %s29, 0
        %s365 = scalar_select %p364, %s29, 0
        %s366 = sadd.s32 %s365, %s363
        %s367 = smul.addr %s366, 8
        %s368 = scalar_lea.vmem %s0, %s367
        %p369 = scmp.lt.s32.totalorder %s28, 1
        %s370 = scalar_select %p369, %s28, 1
        %p371 = scmp.lt.s32.totalorder %s29, 0
        %s372 = scalar_select %p371, %s29, 0
        %s373 = sadd.s32 %s372, %s370
        %s374 = smul.addr %s373, 2
        %s375 = scalar_lea.vmem %s1, %s374
        %p376 = scmp.lt.s32.totalorder %s28, 1
        %s377 = scalar_select %p376, %s28, 1
        %p378 = scmp.lt.s32.totalorder %s29, 0
        %s379 = scalar_select %p378, %s29, 0
        %s380 = sadd.s32 %s379, %s377
        %s381 = smul.addr %s380, 8
        %s382 = scalar_lea.vmem %s3, %s381
        %v384 = vld [vmem:[%s368] sm:$0xff]
        %v385 = vpack.c.bf16 %v384, %v384
        %v386 = vld [vmem:[%s375] sm:$0x3]
        %v387 = vld [vmem:[%s382] sm:$0xff]
        %389 = vset.pattern.permute.xlu0 0
        %390 = vperm.xlu0 %389, %v387
        %v391 = vpop.permute.xlu0 %390
        %v393 = vld [vmem:[#allocation5] sm:$0xf]
        %v394 = vld [vmem:[#allocation5 + $0x4] sm:$0xf]
        %v395 = vld [vmem:[#allocation5 + $0x8] sm:$0xf]
        %v396 = vld [vmem:[#allocation5 + $0xc] sm:$0xf]
        %v401 = vunpack.c.l.b16 %v393
        %v402 = vunpack.c.l.b16 %v394
        %v403 = vunpack.c.l.b16 %v395
        %v404 = vunpack.c.l.b16 %v396
        %v405 = vpack.c.b16 %v402, %v401
        %v406 = vpack.c.b16 %v404, %v403
        %vm409 = vcmask 261120
        %v411 = vsel %vm409, %v385, 0
        %413 = vmatprep.subr.bf16.mxu0 0
        %414 = vmatpush1.bf16.msra.mxu0 %v405
        %415 = vmatprep.subr.bf16.mxu0 0
        %416 = vmatpush1.bf16.msra.mxu0 %v406
        %417 = vmatprep.subr.bf16.mxu0 0
        %418 = vmatpush1.bf16.msra.mxu0 0
        %419 = vmatprep.subr.bf16.mxu0 0
        %420 = vmatpush1.bf16.msra.mxu0 0
        %421 = vmatprep.subr.bf16.mxu0 0
        %422 = vmatpush1.bf16.msra.mxu0 0
        %423 = vmatprep.subr.bf16.mxu0 0
        %424 = vmatpush1.bf16.msra.mxu0 0
        %425 = vmatprep.subr.bf16.mxu0 0
        %426 = vmatpush1.bf16.msra.mxu0 0
        %427 = vmatprep.subr.bf16.mxu0 0
        %428 = vmatpush1.bf16.msra.mxu0 0
        %429 = vmatprep.subr.bf16.mxu0 0
        %430 = vmatpush1.bf16.msra.mxu0 0
        %431 = vmatprep.subr.bf16.mxu0 0
        %432 = vmatpush1.bf16.msra.mxu0 0
        %433 = vmatprep.subr.bf16.mxu0 0
        %434 = vmatpush1.bf16.msra.mxu0 0
        %435 = vmatprep.subr.bf16.mxu0 0
        %436 = vmatpush1.bf16.msra.mxu0 0
        %437 = vmatprep.subr.bf16.mxu0 0
        %438 = vmatpush1.bf16.msra.mxu0 0
        %439 = vmatprep.subr.bf16.mxu0 0
        %440 = vmatpush1.bf16.msra.mxu0 0
        %441 = vmatprep.subr.bf16.mxu0 0
        %442 = vmatpush1.bf16.msra.mxu0 0
        %443 = vmatprep.subr.bf16.mxu0 0
        %444 = vmatpush1.bf16.msra.mxu0 0
        %445 = vmatprep.mubr.bf16.mxu0 0
        %446 = vmatmul.mubr.bf16.gmra.mrb[0].mxu0 %v411
        %v447 = vpop.f32.mrb[0].mxu0
        %v448 = vadd.f32 0.0, %v447
        %v449 = vpop.f32.mrb[0].mxu0
        %v450 = vpop.f32.mrb[0].mxu0
        %v451 = vpop.f32.mrb[0].mxu0
        %452 = vdwg.mxu0
        %s453 = scalar_lea.vmem [#allocation5], 16
        %v454 = vld [vmem:[%s453] sm:$0xf]
        %v455 = vld [vmem:[%s453 + $0x4] sm:$0xf]
        %v456 = vld [vmem:[%s453 + $0x8] sm:$0xf]
        %v457 = vld [vmem:[%s453 + $0xc] sm:$0xf]
        %s458 = scalar_lea.vmem [#allocation5], 32
        %v459 = vld [vmem:[%s458] sm:$0xf]
        %v460 = vld [vmem:[%s458 + $0x4] sm:$0xf]
        %v461 = vld [vmem:[%s458 + $0x8] sm:$0xf]
        %v462 = vld [vmem:[%s458 + $0xc] sm:$0xf]
        %v467 = vunpack.c.l.b16 %v459
        %v468 = vunpack.c.l.b16 %v460
        %v469 = vunpack.c.l.b16 %v461
        %v470 = vunpack.c.l.b16 %v462
        %v471 = vpack.c.b16 %v468, %v467
        %v472 = vpack.c.b16 %v470, %v469
        %475 = vmatprep.subr.bf16.mxu0 0
        %476 = vmatpush1.bf16.msra.mxu0 %v471
        %477 = vmatprep.subr.bf16.mxu0 0
        %478 = vmatpush1.bf16.msra.mxu0 %v472
        %479 = vmatprep.subr.bf16.mxu0 0
        %480 = vmatpush1.bf16.msra.mxu0 0
        %481 = vmatprep.subr.bf16.mxu0 0
        %482 = vmatpush1.bf16.msra.mxu0 0
        %483 = vmatprep.subr.bf16.mxu0 0
        %484 = vmatpush1.bf16.msra.mxu0 0
        %485 = vmatprep.subr.bf16.mxu0 0
        %486 = vmatpush1.bf16.msra.mxu0 0
        %487 = vmatprep.subr.bf16.mxu0 0
        %488 = vmatpush1.bf16.msra.mxu0 0
        %489 = vmatprep.subr.bf16.mxu0 0
        %490 = vmatpush1.bf16.msra.mxu0 0
        %491 = vmatprep.subr.bf16.mxu0 0
        %492 = vmatpush1.bf16.msra.mxu0 0
        %493 = vmatprep.subr.bf16.mxu0 0
        %494 = vmatpush1.bf16.msra.mxu0 0
        %495 = vmatprep.subr.bf16.mxu0 0
        %496 = vmatpush1.bf16.msra.mxu0 0
        %497 = vmatprep.subr.bf16.mxu0 0
        %498 = vmatpush1.bf16.msra.mxu0 0
        %499 = vmatprep.subr.bf16.mxu0 0
        %500 = vmatpush1.bf16.msra.mxu0 0
        %501 = vmatprep.subr.bf16.mxu0 0
        %502 = vmatpush1.bf16.msra.mxu0 0
        %503 = vmatprep.subr.bf16.mxu0 0
        %504 = vmatpush1.bf16.msra.mxu0 0
        %505 = vmatprep.subr.bf16.mxu0 0
        %506 = vmatpush1.bf16.msra.mxu0 0
        %507 = vmatprep.mubr.bf16.mxu0 0
        %508 = vmatmul.mubr.bf16.gmra.mrb[0].mxu0 %v411
        %v509 = vpop.f32.mrb[0].mxu0
        %v510 = vadd.f32 0.0, %v509
        %v511 = vpop.f32.mrb[0].mxu0
        %v512 = vpop.f32.mrb[0].mxu0
        %v513 = vpop.f32.mrb[0].mxu0
        %514 = vdwg.mxu0
        %v515 = vlaneseq
        %v516 = vshrl.u32 %v515, 7
        %vm517 = vcmp.eq.s32.totalorder %v516, 0
        %v518 = vrot.slane %v448, 7
        %v519 = vsel %vm517, 1, 0
        %vm520 = vcmp.eq.s32.totalorder %v519, 1
        %v521 = vlaneseq
        %v522 = vshrl.u32 %v521, 7
        %v523 = vsub.s32 0, %v522
        %v524 = vrot.slane %v386, %v523
        %v525 = vsel %vm520, %v524, %v518
        %vm526 = vcmp.eq.s32.totalorder %v516, 7
        %v527 = vrot.slane %v510, 1
        %v528 = vsel %vm526, 1, 0
        %vm529 = vcmp.eq.s32.totalorder %v528, 1
        %v530 = vlaneseq
        %v531 = vshrl.u32 %v530, 7
        %v532 = vsub.s32 1, %v531
        %v533 = vrot.slane %v386, %v532
        %v534 = vsel %vm529, %v533, %v527
        %v535 = vld [vmem:[%s5] sm:$0x7]
        %v540 = vunpack.c.l.b16 %v454
        %v541 = vunpack.c.l.b16 %v455
        %v542 = vunpack.c.l.b16 %v456
        %v543 = vunpack.c.l.b16 %v457
        %v544 = vpack.c.b16 %v541, %v540
        %v545 = vpack.c.b16 %v543, %v542
        %548 = vmatprep.subr.bf16.mxu0 0
        %549 = vmatpush1.bf16.msra.mxu0 %v544
        %550 = vmatprep.subr.bf16.mxu0 0
        %551 = vmatpush1.bf16.msra.mxu0 %v545
        %552 = vmatprep.subr.bf16.mxu0 0
        %553 = vmatpush1.bf16.msra.mxu0 0
        %554 = vmatprep.subr.bf16.mxu0 0
        %555 = vmatpush1.bf16.msra.mxu0 0
        %556 = vmatprep.subr.bf16.mxu0 0
        %557 = vmatpush1.bf16.msra.mxu0 0
        %558 = vmatprep.subr.bf16.mxu0 0
        %559 = vmatpush1.bf16.msra.mxu0 0
        %560 = vmatprep.subr.bf16.mxu0 0
        %561 = vmatpush1.bf16.msra.mxu0 0
        %562 = vmatprep.subr.bf16.mxu0 0
        %563 = vmatpush1.bf16.msra.mxu0 0
        %564 = vmatprep.subr.bf16.mxu0 0
        %565 = vmatpush1.bf16.msra.mxu0 0
        %566 = vmatprep.subr.bf16.mxu0 0
        %567 = vmatpush1.bf16.msra.mxu0 0
        %568 = vmatprep.subr.bf16.mxu0 0
        %569 = vmatpush1.bf16.msra.mxu0 0
        %570 = vmatprep.subr.bf16.mxu0 0
        %571 = vmatpush1.bf16.msra.mxu0 0
        %572 = vmatprep.subr.bf16.mxu0 0
        %573 = vmatpush1.bf16.msra.mxu0 0
        %574 = vmatprep.subr.bf16.mxu0 0
        %575 = vmatpush1.bf16.msra.mxu0 0
        %576 = vmatprep.subr.bf16.mxu0 0
        %577 = vmatpush1.bf16.msra.mxu0 0
        %578 = vmatprep.subr.bf16.mxu0 0
        %579 = vmatpush1.bf16.msra.mxu0 0
        %580 = vmatprep.mubr.bf16.mxu0 0
        %581 = vmatmul.mubr.bf16.gmra.mrb[0].mxu0 %v411
        %v582 = vpop.f32.mrb[0].mxu0
        %v583 = vadd.f32 %v525, %v582
        %v584 = vpop.f32.mrb[0].mxu0
        %v585 = vpop.f32.mrb[0].mxu0
        %v586 = vpop.f32.mrb[0].mxu0
        %587 = vdwg.mxu0
        %v588 = vadd.f32 %v583, %v534
        %v589 = vlaneseq
        %v590 = vshrl.u32 %v589, 7
        %v591 = vsub.s32 0, %v590
        %v592 = vrot.slane %v535, %v591
        %v593 = vadd.f32 %v588, %v592
        %v594 = vmul.f32 %v593, %v391
        %v595 = vtanh.pop %v594
        %v596 = vld [vmem:[%s308] sm:$0xff]
        %v597 = vadd.f32 %v596, %v595
        %v598 = vsel %vm409, %v597, 0.0
        %599 = vadd.xlane.f32.xlu0 %v598
        %v600 = vpop.xlane.xlu0 %599
        %v601 = vrcp.pop 32.0
        %v602 = vmul.f32 %v600, %v601
        %v603 = vmul.f32 %v597, %v597
        %v604 = vsel %vm409, %v603, 0.0
        %605 = vadd.xlane.f32.xlu0 %v604
        %v606 = vpop.xlane.xlu0 %605
        %v607 = vmul.f32 %v606, %v601
        %v608 = vmul.f32 %v602, %v602
        %v609 = vsub.f32 %v607, %v608
        %v610 = vmax.f32 %v609, 0.0
        %v611 = vsub.f32 %v597, %v602
        %v612 = vadd.f32 %v610, 1e-07
        %v613 = vrsqrt.pop %v612
        %v614 = vmul.f32 %v611, %v613
        %v615 = vlaneseq
        %v616 = vshrl.u32 %v615, 7
        %v617 = vsub.s32 1, %v616
        %v618 = vrot.slane %v535, %v617
        %v619 = vmul.f32 %v614, %v618
        %v620 = vlaneseq
        %v621 = vshrl.u32 %v620, 7
        %v622 = vsub.s32 2, %v621
        %v623 = vrot.slane %v535, %v622
        %v624 = vadd.f32 %v619, %v623
        %v625 = vmul.f32 %v624, %v391
        %626 = vst.msk [vmem:[%s361] sm:$0xff] %vm409, %v625
        %s627 = sand.u32 %s200, 1
        %s628 = scalar_lea.sflag [#allocation4], %s627
        %s629 = sand.u32 %s200, 1
        %s630 = smul.addr %s629, 8
        %s631 = scalar_lea.vmem [#allocation7], %s630
        // Predicated region
        $region53: #{tpu_custom_call.1} parent=43 // pred_check
          %p632 = pneg %p210
        $region54: #{tpu_custom_call.1} parent=43 // pred_check_branch
          %634 = sbr.rel (%p632) target = $region56
        $region55: #{tpu_custom_call.1} parent=43 // pred_region
          %s636 = ssub.s32 128, 128
          %637 = vsyncadd %s628, %s636
          %s638 = sadd.s32 %s29, %s28
          %s639 = smul.addr %s638, 128
          %s640 = scalar_lea.hbm %s6, %s639
          %s642 = sshll.u32 %s631, 4
          %s643 = int_to_ptr.vmem [resolvable:$true] %s642
          %645 = dma.vmem_to_hbm [thread:$0]  %s643, 128, %s640, %s628
        $region56: #{tpu_custom_call.1} parent=43 // pred_fallthru
          _
      $region44: #{tpu_custom_call.1} parent=5 // pred_fallthru
        _
      %p646 = scmp.le.s32.totalorder 2, %s19
      // Predicated region
      $region57: #{tpu_custom_call.1} parent=5 // pred_check
        %p647 = pneg %p646
      $region58: #{tpu_custom_call.1} parent=5 // pred_check_branch
        %649 = sbr.rel (%p647) target = $region60
      $region59: #{tpu_custom_call.1} parent=5 // pred_region
        %s650 = ssub.s32 %s19, 2
        // Predicated region
        $region61: #{tpu_custom_call.1} parent=59 // pred_check
          %p651 = pneg %p216
        $region62: #{tpu_custom_call.1} parent=59 // pred_check_branch
          %653 = sbr.rel (%p651) target = $region64
        $region63: #{tpu_custom_call.1} parent=59 // pred_region
          %s654 = sand.u32 %s201, 1
          %s655 = scalar_lea.sflag [#allocation4], %s654
          %s656 = sand.u32 %s201, 1
          %s657 = smul.addr %s656, 8
          %s658 = scalar_lea.vmem [#allocation7], %s657
          %659 = dma.done %s655, 128
        $region64: #{tpu_custom_call.1} parent=59 // pred_fallthru
          _
      $region60: #{tpu_custom_call.1} parent=5 // pred_fallthru
        _
    $region6: #{tpu_custom_call.1} parent=1 // loop_footer
      %s23 = sadd.s32 1, %s19
    $region7: #{tpu_custom_call.1} parent=1 // loop_footer_branch
      %18 = sbr.rel target = $region3
    $region8: #{tpu_custom_call.1} parent=1 // loop_exit
      _
    %660 = vsyncpa [#allocation3], 1
    %s661 = scalar_lea.sflag [#allocation3], 1
    %662 = vsyncpa %s661, 1
    %663 = vsyncpa [#allocation6], 1
    %664 = vsyncpa [#allocation4], 1
    %s665 = scalar_lea.sflag [#allocation4], 1
    %666 = vsyncpa %s665, 1

</llo_original>
